<compile_context>
chip_gen: v6e
topology: v6e:2x2x1
jax: 0.10.0
libtpu: 0.0.40
codegen_flags: <defaults>
</compile_context>

<pallas_src>
import functools
import math

import jax
import jax.numpy as jnp
from jax.experimental import pallas as pl
from jax.experimental.pallas import tpu as pltpu


_VMEM_WORKSET_BUDGET = 36 << 20   # per-step working-set target (v7x-safe)
_VMEM_LIMIT_FLOOR = 32 << 20
_VMEM_LIMIT_CAP = 48 << 20        # never request the full 64 MiB of v7x


def _round_up(x, m):
    return ((x + m - 1) // m) * m


def _sublane(dtype):
    # (8,128) quantum for 4-byte, (16,128) for 2-byte, (32,128) for 1-byte.
    return max(8, 32 // jnp.dtype(dtype).itemsize)


@functools.lru_cache(maxsize=None)
def _max_packed_width():
    """Widest packed row (lanes) allowed for the MXU segmented-mean projector."""
    try:
        kind = jax.devices()[0].device_kind.lower()
    except Exception:
        return 640
    # <= v5: bf16-only MXU -> the two f32 (rt,gd)@(gd,gd) dots are multi-pass
    # emulated; keep gd at one lane tile so they stay under the HBM DMA time.
    if any(v in kind for v in ("v2", "v3", "v4", "v5")):
        return 128
    return 640


@functools.lru_cache(maxsize=None)
def _single_buffering_ok():
    """Probe once whether BlockSpec(pipeline_mode=pl.Buffered(1)) works here."""
    try:
        def _probe(x_ref, o_ref):
            o_ref[...] = x_ref[...] + 1.0
        fn = pl.pallas_call(
            _probe,
            out_shape=jax.ShapeDtypeStruct((8, 128), jnp.float32),
            grid=(2,),
            in_specs=[pl.BlockSpec((8, 128), lambda i: (0, 0),
                                   pipeline_mode=pl.Buffered(1))],
            out_specs=pl.BlockSpec((8, 128), lambda i: (0, 0)),
        )
        jax.block_until_ready(fn(jnp.zeros((8, 128), jnp.float32)))
        return True
    except Exception:
        return False


def _invariant_spec(block_shape):
    """Constant-index operand: single-buffer it when supported (frees VMEM)."""
    index_map = lambda *_: (0,) * len(block_shape)
    if _single_buffering_ok():
        return pl.BlockSpec(block_shape, index_map, pipeline_mode=pl.Buffered(1))
    return pl.BlockSpec(block_shape, index_map)


def _pick_rows_tile(requested, rows, sub, per_row_bytes, fixed_bytes):
    """Largest sublane-multiple row tile fitting the VMEM budget; keep >= 2
    grid steps when there is enough work (v7x shards the grid over 2 TCs)."""
    budget_rows = (_VMEM_WORKSET_BUDGET - fixed_bytes) // max(per_row_bytes, 1)
    budget_rows = max(sub, (budget_rows // sub) * sub)
    rt = min(_round_up(requested, sub), budget_rows, _round_up(rows, sub))
    if rows >= 2 * sub:
        rt = min(rt, _round_up(-(-rows // 2), sub))
    return max(rt, sub)


def _vmem_limit(est_bytes):
    return int(min(_VMEM_LIMIT_CAP, max(_VMEM_LIMIT_FLOOR, (est_bytes * 5) // 4)))


# ---------------------------------------------------------------------------
# Standalone LayerNorm kernels.
# ---------------------------------------------------------------------------
def _layernorm_kernel(x_ref, gamma_ref, beta_ref, o_ref, *, eps):
    # One token per row (row width == normalized dim): plain VPU reduce.
    x = x_ref[...].astype(jnp.float32)
    mean = jnp.mean(x, axis=-1, keepdims=True)
    xc = x - mean
    var = jnp.mean(xc * xc, axis=-1, keepdims=True)
    y = xc * jax.lax.rsqrt(var + eps) * gamma_ref[...] + beta_ref[...]
    o_ref[...] = y.astype(o_ref.dtype)


def _layernorm_packed_kernel(x_ref, gamma_ref, beta_ref, proj_ref, o_ref, *, eps):
    # g tokens packed per lane-dense row; per-token mean/var is a segmented
    # reduction done with the hoisted block-diagonal averaging projector on
    # the otherwise-idle MXU.  Two-pass mean/var (numerically safe, f32).
    x = x_ref[...].astype(jnp.float32)
    proj = proj_ref[...]
    mean = jnp.dot(x, proj, preferred_element_type=jnp.float32)
    xc = x - mean
    var = jnp.dot(xc * xc, proj, preferred_element_type=jnp.float32)
    y = xc * jax.lax.rsqrt(var + eps) * gamma_ref[...] + beta_ref[...]
    o_ref[...] = y.astype(o_ref.dtype)


def layernorm_pallas(x, gamma, beta, *, eps=1e-5, rows_tile=4096,
                     max_packed_width=None):
    """LayerNorm over the last axis of x (any leading shape)."""
    orig_shape = x.shape
    d = orig_shape[-1]
    r = math.prod(orig_shape[:-1]) if len(orig_shape) > 1 else 1
    if max_packed_width is None:
        max_packed_width = _max_packed_width()

    # Lane packing: fold g = lcm(d,128)//d consecutive tokens into one
    # lane-dense row of width gd = lcm(d,128) (d=32 -> 4x128, d=96 -> 4x384,
    # d=80 -> 8x640).  Lane-dense blocks avoid masked vst partial stores and
    # the up-to-4x VMEM/vreg waste of d < 128 rows.
    g, gd = 1, d
    if d % 128 != 0:
        lcm = (d * 128) // math.gcd(d, 128)
        if lcm <= max_packed_width:
            g, gd = lcm // d, lcm

    x_flat = x.reshape(r, d)
    r_pad = _round_up(r, g)
    if r_pad != r:
        # Only pays an extra copy when the token count is not a multiple of g.
        x_flat = jnp.pad(x_flat, ((0, r_pad - r), (0, 0)))
    rp = r_pad // g
    x2 = x_flat.reshape(rp, gd)          # free: contiguous row-major relabel

    # Tiny params: pre-cast to f32 and pre-tile to the packed width once.
    gamma2 = jnp.tile(gamma.astype(jnp.float32).reshape(1, d), (1, g))
    beta2 = jnp.tile(beta.astype(jnp.float32).reshape(1, d), (1, g))

    itemsize = x.dtype.itemsize
    sub = _sublane(x.dtype)
    buf = 1 if _single_buffering_ok() else 2
    fixed = buf * 2 * gd * 4 + (buf * gd * gd * 4 if g > 1 else 0)
    # Double-buffered in + out blocks + ~2 live f32 temporaries per element.
    per_row = gd * (2 * itemsize + 2 * itemsize + 2 * 4)
    rt = _pick_rows_tile(rows_tile, rp, sub, per_row, fixed)
    grid = (pl.cdiv(rp, rt),)            # ragged last block masked; no pad/slice
    vmem_limit = _vmem_limit(fixed + rt * per_row)

    if g > 1:
        # Hoisted block-diagonal averaging projector: proj[j,k] = 1/d iff lanes
        # j, k belong to the same packed token (segment of width d).
        seg = jnp.arange(gd, dtype=jnp.int32) // d
        proj = (seg[:, None] == seg[None, :]).astype(jnp.float32) * (1.0 / d)
        kernel = functools.partial(_layernorm_packed_kernel, eps=eps)
        in_specs = [pl.BlockSpec((rt, gd), lambda i: (i, 0)),
                    _invariant_spec((1, gd)),
                    _invariant_spec((1, gd)),
                    _invariant_spec((gd, gd))]
        operands = (x2, gamma2, beta2, proj)
    else:
        kernel = functools.partial(_layernorm_kernel, eps=eps)
        in_specs = [pl.BlockSpec((rt, gd), lambda i: (i, 0)),
                    _invariant_spec((1, gd)),
                    _invariant_spec((1, gd))]
        operands = (x2, gamma2, beta2)

    out = pl.pallas_call(
        kernel,
        out_shape=jax.ShapeDtypeStruct((rp, gd), x.dtype),
        grid=grid,
        in_specs=in_specs,
        out_specs=pl.BlockSpec((rt, gd), lambda i: (i, 0)),
        compiler_params=pltpu.CompilerParams(
            dimension_semantics=("parallel",),
            vmem_limit_bytes=vmem_limit),
    )(*operands)

    out = out.reshape(r_pad, d)
    if r_pad != r:
        out = out[:r]
    return out.reshape(orig_shape)


# ---------------------------------------------------------------------------
# Fused PreNorm + Linear kernel:  LayerNorm(x) @ W + b  in one HBM pass.
# ---------------------------------------------------------------------------
def _prenorm_linear_kernel(x_ref, w_ref, b_ref, o_ref, *, eps):
    # LN affine already folded into W / b by the wrapper.
    x = x_ref[...].astype(jnp.float32)
    mean = jnp.mean(x, axis=-1, keepdims=True)
    xc = x - mean
    var = jnp.mean(xc * xc, axis=-1, keepdims=True)
    yn = xc * jax.lax.rsqrt(var + eps)
    acc = jnp.dot(yn.astype(w_ref.dtype), w_ref[...],
                  preferred_element_type=jnp.float32)
    o_ref[...] = (acc + b_ref[...]).astype(o_ref.dtype)


def prenorm_linear_pallas(x, gamma, beta, w, b, *, eps=1e-5, rows_tile=2048):
    """fn(LayerNorm(x)) where fn is nn.Linear(D, H): fused, no HBM round trip."""
    orig_shape = x.shape
    d = orig_shape[-1]
    h = w.shape[-1]
    r = math.prod(orig_shape[:-1]) if len(orig_shape) > 1 else 1
    x2 = x.reshape(r, d)

    # Fold the LN affine into the linear (once, off the hot path):
    #   (xn*gamma + beta) @ W + b  ==  xn @ (gamma[:,None]*W) + (beta @ W + b)
    w32 = w.astype(jnp.float32)
    w_fold = (gamma.astype(jnp.float32)[:, None] * w32).astype(w.dtype)
    b_fold = (beta.astype(jnp.float32) @ w32 + b.astype(jnp.float32)).reshape(1, h)

    itemsize = x.dtype.itemsize
    sub = _sublane(x.dtype)
    buf = 1 if _single_buffering_ok() else 2
    fixed = buf * (d * h * w_fold.dtype.itemsize + h * 4)
    # x: double-buffered block + ~2 f32 temps; out: double-buffered + f32 acc.
    per_row = d * (2 * itemsize + 2 * 4) + h * (2 * itemsize + 4)
    rt = _pick_rows_tile(rows_tile, r, sub, per_row, fixed)
    grid = (pl.cdiv(r, rt),)             # ragged last block masked; no pad/slice
    vmem_limit = _vmem_limit(fixed + rt * per_row)

    # NOTE: x / out blocks keep the true widths d / h even when < 128: rows of
    # the full-width array are contiguous in HBM so the DMA is unaffected, and
    # padding h to 128 + re-slicing would add 2-4x output HBM traffic for a
    # store-slot win that is already hidden under the DMA on this mem-bound op.
    out = pl.pallas_call(
        functools.partial(_prenorm_linear_kernel, eps=eps),
        out_shape=jax.ShapeDtypeStruct((r, h), x.dtype),
        grid=grid,
        in_specs=[
            pl.BlockSpec((rt, d), lambda i: (i, 0)),
            _invariant_spec((d, h)),      # weight: constant block, single-buffered
            _invariant_spec((1, h)),      # folded bias (f32)
        ],
        out_specs=pl.BlockSpec((rt, h), lambda i: (i, 0)),
        compiler_params=pltpu.CompilerParams(
            dimension_semantics=("parallel",),
            vmem_limit_bytes=vmem_limit),
    )(x2, w_fold, b_fold)

    return out.reshape(orig_shape[:-1] + (h,))


def prenorm(x, gamma, beta, fn, **kwargs):
    """Generic PreNorm.forward: fn(LayerNorm(x), **kwargs) for arbitrary fn."""
    # TODO(synk): arbitrary fn bodies (attention, conv, ...) are not lowered
    # into the kernel; only the LayerNorm runs in Pallas here.  Use
    # prenorm_linear_pallas when fn starts with nn.Linear.
    return fn(layernorm_pallas(x, gamma, beta), **kwargs)


if __name__ == "__main__":
    key = jax.random.PRNGKey(0)
    B, N, D = 2, 8, 32            # (batch, tokens, dim) -- dim is normalized
    H = 64                        # hidden width of the demo wrapped fn

    k1, k2, k3, k4, k5 = jax.random.split(key, 5)
    x = jax.random.normal(k1, (B, N, D), dtype=jnp.float32)
    gamma = 1.0 + 0.1 * jax.random.normal(k2, (D,), dtype=jnp.float32)
    beta = 0.1 * jax.random.normal(k3, (D,), dtype=jnp.float32)
    w = jax.random.normal(k4, (D, H), dtype=jnp.float32) * 0.02
    b = jax.random.normal(k5, (H,), dtype=jnp.float32) * 0.02

    def ln_ref(xx, gg, bb, eps=1e-5):
        mean = jnp.mean(xx, axis=-1, keepdims=True)
        var = jnp.mean((xx - mean) ** 2, axis=-1, keepdims=True)
        return (xx - mean) * jax.lax.rsqrt(var + eps) * gg + bb

    # 1) Fused PreNorm + Linear (common case: fn begins with nn.Linear).
    out_fused = jax.block_until_ready(prenorm_linear_pallas(x, gamma, beta, w, b))
    ref_fused = ln_ref(x, gamma, beta) @ w + b
    assert out_fused.shape == (B, N, H)
    assert jnp.max(jnp.abs(out_fused - ref_fused)) < 1e-4

    # 2) Generic PreNorm with an arbitrary fn (lane-packed LN path: D=32 -> g=4).
    fn = lambda z: jax.nn.gelu(z @ w + b)
    out_gen = jax.block_until_ready(prenorm(x, gamma, beta, fn))
    ref_gen = fn(ln_ref(x, gamma, beta))
    assert jnp.max(jnp.abs(out_gen - ref_gen)) < 1e-4

    # 3) Generalized packing (MobileViT dim 80 -> g=8 over 640 lanes on v6e/v7x)
    #    with a token count that is NOT a multiple of g (row-padding path).
    #    MXU segmented mean/var -> keep tolerance at ~1e-4-scale, not tighter.
    D3 = 80
    x3 = jax.random.normal(k1, (1, 10, D3), dtype=jnp.float32)
    g3 = 1.0 + 0.1 * jax.random.normal(k2, (D3,), dtype=jnp.float32)
    b3 = 0.1 * jax.random.normal(k3, (D3,), dtype=jnp.float32)
    out3 = jax.block_until_ready(layernorm_pallas(x3, g3, b3))
    assert out3.shape == x3.shape
    assert jnp.max(jnp.abs(out3 - ln_ref(x3, g3, b3))) < 2e-4

    # 4) Un-packable dim (lcm(200,128)=3200 > cap) -> g == 1 fallback, 2-step grid.
    D4 = 200
    x4 = jax.random.normal(k1, (B, N, D4), dtype=jnp.float32)
    g4 = 1.0 + 0.1 * jax.random.normal(k2, (D4,), dtype=jnp.float32)
    b4 = 0.1 * jax.random.normal(k3, (D4,), dtype=jnp.float32)
    out4 = jax.block_until_ready(layernorm_pallas(x4, g4, b4))
    assert jnp.max(jnp.abs(out4 - ln_ref(x4, g4, b4))) < 1e-4

    print("KERNEL_OK")
</pallas_src>

<mosaic_0001>
module attributes {stable_mosaic.version = 11 : i64} {
  func.func @_probe(%arg0: i32, %arg1: memref<8x128xf32, #tpu.memory_space<vmem>>, %arg2: memref<8x128xf32, #tpu.memory_space<vmem>>) attributes {dimension_semantics = [#tpu.dimension_semantics<arbitrary>], iteration_bounds = array<i64: 2>, scalar_prefetch = 0 : i64, scratch_operands = 0 : i64, tpu.core_type = #tpu.core_type<tc>, window_params = [{pipeline_mode = #tpu.pipeline_mode<synchronous>, transform_indices = @transform_0, window_bounds = array<i64: 8, 128>}, {pipeline_mode = #tpu.pipeline_mode<synchronous>, transform_indices = @transform_1, window_bounds = array<i64: 8, 128>}]} {
    %c0 = arith.constant 0 : index
    %c0_0 = arith.constant 0 : index
    %0 = vector.load %arg1[%c0, %c0_0] : memref<8x128xf32, #tpu.memory_space<vmem>>, vector<8x128xf32>
    %cst = arith.constant 1.000000e+00 : f32
    %1 = vector.broadcast %cst : f32 to vector<8x128xf32>
    %2 = arith.addf %0, %1 : vector<8x128xf32>
    %c0_1 = arith.constant 0 : index
    %c0_2 = arith.constant 0 : index
    %3 = vector.load %arg2[%c0_1, %c0_2] : memref<8x128xf32, #tpu.memory_space<vmem>>, vector<8x128xf32>
    tpu.vector_store %arg2[%c0_1, %c0_2], %2 {strides = array<i32>} : memref<8x128xf32, #tpu.memory_space<vmem>>, vector<8x128xf32>,
    return
  }
  func.func @transform_0(%arg0: i32) -> (i32, i32) {
    %c0_i32 = arith.constant 0 : i32
    %c0_i32_0 = arith.constant 0 : i32
    %c0_i32_1 = arith.constant 0 : i32
    return %c0_i32, %c0_i32_0 : i32, i32
  }
  func.func @transform_1(%arg0: i32) -> (i32, i32) {
    %c0_i32 = arith.constant 0 : i32
    %c0_i32_0 = arith.constant 0 : i32
    %c0_i32_1 = arith.constant 0 : i32
    return %c0_i32, %c0_i32_0 : i32, i32
  }
}

module attributes {stable_mosaic.version = 11 : i64} {
  func.func @_prenorm_linear_kernel(%arg0: i32, %arg1: memref<8x32xf32, #tpu.memory_space<vmem>>, %arg2: memref<32x64xf32, #tpu.memory_space<vmem>>, %arg3: memref<1x64xf32, #tpu.memory_space<vmem>>, %arg4: memref<8x64xf32, #tpu.memory_space<vmem>>) attributes {dimension_semantics = [#tpu.dimension_semantics<parallel>], iteration_bounds = array<i64: 2>, scalar_prefetch = 0 : i64, scratch_operands = 0 : i64, tpu.core_type = #tpu.core_type<tc>, window_params = [{transform_indices = @transform_0, window_bounds = array<i64: 8, 32>}, {pipeline_mode = #tpu.pipeline_mode<synchronous>, transform_indices = @transform_1, window_bounds = array<i64: 32, 64>}, {pipeline_mode = #tpu.pipeline_mode<synchronous>, transform_indices = @transform_2, window_bounds = array<i64: 1, 64>}, {transform_indices = @transform_3, window_bounds = array<i64: 8, 64>}]} {
    %c0 = arith.constant 0 : index
    %c0_0 = arith.constant 0 : index
    %0 = vector.load %arg1[%c0, %c0_0] : memref<8x32xf32, #tpu.memory_space<vmem>>, vector<8x32xf32>
    %cst = arith.constant dense<0.000000e+00> : vector<8xf32>
    %1 = vector.multi_reduction <add>, %0, %cst [1] : vector<8x32xf32> to vector<8xf32>
    %2 = vector.shape_cast %1 : vector<8xf32> to vector<8x1xf32>
    %cst_1 = arith.constant 3.200000e+01 : f32
    %3 = vector.broadcast %cst_1 : f32 to vector<8x1xf32>
    %4 = arith.divf %2, %3 : vector<8x1xf32>
    %5 = vector.broadcast %4 : vector<8x1xf32> to vector<8x32xf32>
    %6 = arith.subf %0, %5 : vector<8x32xf32>
    %7 = arith.mulf %6, %6 : vector<8x32xf32>
    %cst_2 = arith.constant dense<0.000000e+00> : vector<8xf32>
    %8 = vector.multi_reduction <add>, %7, %cst_2 [1] : vector<8x32xf32> to vector<8xf32>
    %9 = vector.shape_cast %8 : vector<8xf32> to vector<8x1xf32>
    %cst_3 = arith.constant 3.200000e+01 : f32
    %10 = vector.broadcast %cst_3 : f32 to vector<8x1xf32>
    %11 = arith.divf %9, %10 : vector<8x1xf32>
    %cst_4 = arith.constant 9.99999974E-6 : f32
    %12 = vector.broadcast %cst_4 : f32 to vector<8x1xf32>
    %13 = arith.addf %11, %12 : vector<8x1xf32>
    %14 = math.rsqrt %13 : vector<8x1xf32>
    %15 = vector.broadcast %14 : vector<8x1xf32> to vector<8x32xf32>
    %16 = arith.mulf %6, %15 : vector<8x32xf32>
    %c0_5 = arith.constant 0 : index
    %c0_6 = arith.constant 0 : index
    %17 = vector.load %arg2[%c0_5, %c0_6] : memref<32x64xf32, #tpu.memory_space<vmem>>, vector<32x64xf32>
    %cst_7 = arith.constant dense<0.000000e+00> : vector<8x64xf32>
    %18 = tpu.matmul %16, %17, %cst_7 {dimension_numbers = #tpu.dot_dimension_numbers<[1], [0], [0], [1], [0, 0, 1, 1], [], []>} : vector<8x32xf32>, vector<32x64xf32>, vector<8x64xf32> -> vector<8x64xf32>
    %c0_8 = arith.constant 0 : index
    %c0_9 = arith.constant 0 : index
    %19 = vector.load %arg3[%c0_8, %c0_9] : memref<1x64xf32, #tpu.memory_space<vmem>>, vector<1x64xf32>
    %20 = vector.broadcast %19 : vector<1x64xf32> to vector<8x64xf32>
    %21 = arith.addf %18, %20 : vector<8x64xf32>
    %c0_10 = arith.constant 0 : index
    %c0_11 = arith.constant 0 : index
    %22 = vector.load %arg4[%c0_10, %c0_11] : memref<8x64xf32, #tpu.memory_space<vmem>>, vector<8x64xf32>
    tpu.vector_store %arg4[%c0_10, %c0_11], %21 {strides = array<i32>} : memref<8x64xf32, #tpu.memory_space<vmem>>, vector<8x64xf32>,
    return
  }
  func.func @transform_0(%arg0: i32) -> (i32, i32) {
    %c0_i32 = arith.constant 0 : i32
    %c0_i32_0 = arith.constant 0 : i32
    return %arg0, %c0_i32 : i32, i32
  }
  func.func @transform_1(%arg0: i32) -> (i32, i32) {
    %c0_i32 = arith.constant 0 : i32
    %c0_i32_0 = arith.constant 0 : i32
    %c0_i32_1 = arith.constant 0 : i32
    return %c0_i32, %c0_i32_0 : i32, i32
  }
  func.func @transform_2(%arg0: i32) -> (i32, i32) {
    %c0_i32 = arith.constant 0 : i32
    %c0_i32_0 = arith.constant 0 : i32
    %c0_i32_1 = arith.constant 0 : i32
    return %c0_i32, %c0_i32_0 : i32, i32
  }
  func.func @transform_3(%arg0: i32) -> (i32, i32) {
    %c0_i32 = arith.constant 0 : i32
    %c0_i32_0 = arith.constant 0 : i32
    return %arg0, %c0_i32 : i32, i32
  }
}

</mosaic_0001>

<llo_original>
// kernel: tpu_custom_call.1
$region0: #{tpu_custom_call.1}
  #allocation0 [shape = 'u32[]', space=smem, size = 0x4, offset = 0x4, fixed_abs, tag = 'smem constant byte address 0x4 - core index']
  #allocation1 [shape = 'u32[144,128]{1,0:T(1,128)}', space=vmem, size = 0x12000, scoped, tag = 'internal scratch']
  %s0 = inlined_call_operand.hbm [shape: f32[8,128], index: 0, kind: input, shape index: {}]
  %s1 = inlined_call_operand.hbm [shape: f32[8,128], index: 1, kind: output, shape index: {}]
  %s2 = sld [smem:[#allocation0]]
  $region41: #{tpu_custom_call.1} parent=0
    _
  %s4 = ssub.s32 1, %s2
  %s5 = scalar_select 0, %s4, %s2
  $region1: #{tpu_custom_call.1} parent=0
    #allocation2 [shape = 'u8[4096]{0}', space=vmem, size = 0x1000, scoped, tag = 'input window, operand 0, single buffered']
    #allocation3 [shape = 's32[2]{0}', space=sflag, size = 0x8, scoped, tag = 'scoped memory for tpu_custom_call.1']
    #allocation4 [shape = 's32[2]{0}', space=sflag, size = 0x8, scoped, tag = 'scoped memory for tpu_custom_call.1']
    #allocation5 [shape = 'u8[4096]{0}', space=vmem, size = 0x1000, scoped, tag = 'output window, operand 0, single buffered']
    %6 = vsyncpa [#allocation3], 0
    %7 = vsyncpa [#allocation4], 0
    loop: start=0, step=1, limit=4
    $region2: #{tpu_custom_call.1} parent=1 // loop_pre_header
      _
    $region3: #{tpu_custom_call.1} parent=1 // loop_header
      %s9 = sphi 0, %s13
      %p10 = scmp.ge.s32.totalorder %s9, 4
      %s17 = sphi 0, %s17
      %s19 = sphi 0, %s17
      %s20 = sphi 0, %s19
      %s34 = sphi 0, %s20
      %s38 = sphi 0, %s38
      %s40 = sphi 0, %s38
      %s41 = sphi 0, %s40
      %s55 = sphi 0, %s41
    $region4: #{tpu_custom_call.1} parent=1 // loop_header_branch
      %12 = sbr.rel (%p10) target = $region8
    $region5: #{tpu_custom_call.1} parent=1 // loop_body
      %s14 = ssub.s32 %s9, 1
      %s15 = ssub.s32 %s9, 2
      %s16 = sadd.s32 %s9, 1
      %s18 = sadd.s32 %s17, 1
      %p21 = scmp.eq.s32.totalorder %s9, 1
      %p22 = scmp.ne.s32.totalorder %s17, %s19
      %p23 = scmp.eq.s32.totalorder %s9, 0
      %p24 = por %p22, %p23
      %p25 = scmp.ne.s32.totalorder %s17, %s19
      %p26 = scmp.eq.s32.totalorder %s14, 1
      %p27 = por %p25, %p26
      %p28 = scmp.ne.s32.totalorder %s19, %s20
      %p29 = scmp.eq.s32.totalorder %s14, 0
      %p30 = por %p28, %p29
      %p31 = scmp.ne.s32.totalorder %s19, %s20
      %p32 = scmp.eq.s32.totalorder %s15, 1
      %p33 = por %p31, %p32
      %p35 = scmp.ne.s32.totalorder %s20, %s34
      %p36 = scmp.eq.s32.totalorder %s15, 0
      %p37 = por %p35, %p36
      %s39 = sadd.s32 %s38, 1
      %p42 = scmp.eq.s32.totalorder %s9, 1
      %p43 = scmp.ne.s32.totalorder %s38, %s40
      %p44 = scmp.eq.s32.totalorder %s9, 0
      %p45 = por %p43, %p44
      %p46 = scmp.ne.s32.totalorder %s38, %s40
      %p47 = scmp.eq.s32.totalorder %s14, 1
      %p48 = por %p46, %p47
      %p49 = scmp.ne.s32.totalorder %s40, %s41
      %p50 = scmp.eq.s32.totalorder %s14, 0
      %p51 = por %p49, %p50
      %p52 = scmp.ne.s32.totalorder %s40, %s41
      %p53 = scmp.eq.s32.totalorder %s15, 1
      %p54 = por %p52, %p53
      %p56 = scmp.ne.s32.totalorder %s41, %s55
      %p57 = scmp.eq.s32.totalorder %s15, 0
      %p58 = por %p56, %p57
      %p59 = scmp.le.s32.totalorder 1, %s9
      %p60 = scmp.lt.s32.totalorder %s9, 3
      %p61 = pnand %p59, %p60
      %p62 = pneg %p61
      // Predicated region
      $region9: #{tpu_custom_call.1} parent=5 // pred_check
        _
      $region10: #{tpu_custom_call.1} parent=5 // pred_check_branch
        %64 = sbr.rel (%p61) target = $region12
      $region11: #{tpu_custom_call.1} parent=5 // pred_region
        %s65 = ssub.s32 %s9, 1
        // Predicated region
        $region13: #{tpu_custom_call.1} parent=11 // pred_check
          %p66 = pneg %p30
        $region14: #{tpu_custom_call.1} parent=11 // pred_check_branch
          %68 = sbr.rel (%p66) target = $region16
        $region15: #{tpu_custom_call.1} parent=11 // pred_region
          %s70 = ssub.s32 128, 128
          %71 = vsyncadd [#allocation3], %s70
          %s73 = sshll.u32 [#allocation2], 4
          %s74 = int_to_ptr.vmem [resolvable:$true] %s73
          %76 = dma.hbm_to_vmem [thread:$0]  %s0, 128, %s74, [#allocation3]
        $region16: #{tpu_custom_call.1} parent=11 // pred_fallthru
          _
      $region12: #{tpu_custom_call.1} parent=5 // pred_fallthru
        _
      %p77 = scmp.lt.s32.totalorder %s9, 2
      // Predicated region
      $region17: #{tpu_custom_call.1} parent=5 // pred_check
        %p78 = pneg %p77
      $region18: #{tpu_custom_call.1} parent=5 // pred_check_branch
        %80 = sbr.rel (%p78) target = $region20
      $region19: #{tpu_custom_call.1} parent=5 // pred_region
        _
      $region20: #{tpu_custom_call.1} parent=5 // pred_fallthru
        _
      %p81 = scmp.le.s32.totalorder 1, %s9
      %p82 = scmp.lt.s32.totalorder %s9, 3
      %p83 = pnand %p81, %p82
      %p84 = pneg %p83
      // Predicated region
      $region21: #{tpu_custom_call.1} parent=5 // pred_check
        _
      $region22: #{tpu_custom_call.1} parent=5 // pred_check_branch
        %86 = sbr.rel (%p83) target = $region24
      $region23: #{tpu_custom_call.1} parent=5 // pred_region
        %s87 = ssub.s32 %s9, 1
        // Predicated region
        $region25: #{tpu_custom_call.1} parent=23 // pred_check
          %p88 = pneg %p30
        $region26: #{tpu_custom_call.1} parent=23 // pred_check_branch
          %90 = sbr.rel (%p88) target = $region28
        $region27: #{tpu_custom_call.1} parent=23 // pred_region
          %91 = dma.done [#allocation3], 128
        $region28: #{tpu_custom_call.1} parent=23 // pred_fallthru
          _
        %p92 = pneg %p30
        %p93 = pneg %p27
        %p94 = pneg %p51
        %p95 = pneg %p48
        %v96 = vld [vmem:[#allocation2] sm:$0xff]
        %v97 = vadd.f32 %v96, 1.0
        %98 = vst [vmem:[#allocation5] sm:$0xff] %v97
        // Predicated region
        $region29: #{tpu_custom_call.1} parent=23 // pred_check
          %p99 = pneg %p48
        $region30: #{tpu_custom_call.1} parent=23 // pred_check_branch
          %101 = sbr.rel (%p99) target = $region32
        $region31: #{tpu_custom_call.1} parent=23 // pred_region
          %s103 = ssub.s32 128, 128
          %104 = vsyncadd [#allocation4], %s103
          %s106 = sshll.u32 [#allocation5], 4
          %s107 = int_to_ptr.vmem [resolvable:$true] %s106
          %109 = dma.vmem_to_hbm [thread:$0]  %s107, 128, %s1, [#allocation4]
        $region32: #{tpu_custom_call.1} parent=23 // pred_fallthru
          _
        // Predicated region
        $region33: #{tpu_custom_call.1} parent=23 // pred_check
          %p110 = pneg %p48
        $region34: #{tpu_custom_call.1} parent=23 // pred_check_branch
          %112 = sbr.rel (%p110) target = $region36
        $region35: #{tpu_custom_call.1} parent=23 // pred_region
          %113 = dma.done [#allocation4], 128
        $region36: #{tpu_custom_call.1} parent=23 // pred_fallthru
          _
      $region24: #{tpu_custom_call.1} parent=5 // pred_fallthru
        _
      %p114 = scmp.le.s32.totalorder 2, %s9
      // Predicated region
      $region37: #{tpu_custom_call.1} parent=5 // pred_check
        %p115 = pneg %p114
      $region38: #{tpu_custom_call.1} parent=5 // pred_check_branch
        %117 = sbr.rel (%p115) target = $region40
      $region39: #{tpu_custom_call.1} parent=5 // pred_region
        %s118 = ssub.s32 %s9, 2
      $region40: #{tpu_custom_call.1} parent=5 // pred_fallthru
        _
    $region6: #{tpu_custom_call.1} parent=1 // loop_footer
      %s13 = sadd.s32 1, %s9
    $region7: #{tpu_custom_call.1} parent=1 // loop_footer_branch
      %8 = sbr.rel target = $region3
    $region8: #{tpu_custom_call.1} parent=1 // loop_exit
      _
    %119 = vsyncpa [#allocation3], 1
    %s120 = scalar_lea.sflag [#allocation3], 1
    %121 = vsyncpa %s120, 1
    %122 = vsyncpa [#allocation4], 1
    %s123 = scalar_lea.sflag [#allocation4], 1
    %124 = vsyncpa %s123, 1

// kernel: tpu_custom_call.1
$region0: #{tpu_custom_call.1}
  #allocation0 [shape = 'u32[]', space=smem, size = 0x4, offset = 0x4, fixed_abs, tag = 'smem constant byte address 0x4 - core index']
  #allocation1 [shape = 'u32[144,128]{1,0:T(1,128)}', space=vmem, size = 0x12000, scoped, tag = 'internal scratch']
  %s0 = inlined_call_operand.hbm [shape: f32[16,32], index: 0, kind: input, shape index: {}]
  %s1 = inlined_call_operand.hbm [shape: f32[32,64], index: 1, kind: input, shape index: {}]
  %s2 = inlined_call_operand.vmem [shape: f32[1,64], index: 2, kind: input, shape index: {}]
  %s3 = inlined_call_operand.hbm [shape: f32[16,64], index: 3, kind: output, shape index: {}]
  %s4 = sld [smem:[#allocation0]]
  $region53: #{tpu_custom_call.1} parent=0
    _
  %s6 = ssub.s32 1, %s4
  %s7 = scalar_select 0, %s6, %s4
  $region1: #{tpu_custom_call.1} parent=0
    #allocation2 [shape = 'u8[8192]{0}', space=vmem, size = 0x2000, scoped, tag = 'input window, operand 0']
    #allocation3 [shape = 's32[2]{0}', space=sflag, size = 0x8, scoped, tag = 'scoped memory for tpu_custom_call.1']
    #allocation4 [shape = 's32[2]{0}', space=sflag, size = 0x8, scoped, tag = 'scoped memory for tpu_custom_call.1']
    #allocation5 [shape = 'u8[16384]{0}', space=vmem, size = 0x4000, scoped, tag = 'input window, operand 1, single buffered']
    #allocation6 [shape = 's32[1]{0}', space=sflag, size = 0x4, scoped, tag = 'scoped memory for tpu_custom_call.1']
    #allocation7 [shape = 'u8[8192]{0}', space=vmem, size = 0x2000, scoped, tag = 'output window, operand 0']
    %8 = vsyncpa [#allocation3], 0
    %s9 = scalar_lea.sflag [#allocation3], 1
    %10 = vsyncpa %s9, 0
    %11 = vsyncpa [#allocation6], 0
    %12 = vsyncpa [#allocation4], 0
    %s13 = scalar_lea.sflag [#allocation4], 1
    %14 = vsyncpa %s13, 0
    loop: start=0, step=1, limit=4
    $region2: #{tpu_custom_call.1} parent=1 // loop_pre_header
      _
    $region3: #{tpu_custom_call.1} parent=1 // loop_header
      %s16 = sphi 0, %s20
      %p17 = scmp.ge.s32.totalorder %s16, 4
      %s26 = sphi 0, %s28
      %s29 = sphi 0, %s26
      %s30 = sphi 0, %s29
      %s46 = sphi 0, %s30
      %s50 = sphi 0, %s50
      %s52 = sphi 0, %s50
      %s53 = sphi 0, %s52
      %s67 = sphi 0, %s53
      %s71 = sphi 0, %s71
      %s73 = sphi 0, %s71
      %s74 = sphi 0, %s73
      %s88 = sphi 0, %s74
      %s94 = sphi 0, %s96
      %s97 = sphi 0, %s94
      %s98 = sphi 0, %s97
      %s114 = sphi 0, %s98
    $region4: #{tpu_custom_call.1} parent=1 // loop_header_branch
      %19 = sbr.rel (%p17) target = $region8
    $region5: #{tpu_custom_call.1} parent=1 // loop_body
      %s21 = ssub.s32 %s16, 1
      %s22 = ssub.s32 %s16, 2
      %s23 = sadd.s32 %s16, 1
      %s24 = ssub.s32 %s16, %s23
      %p25 = scmp.eq.s32.totalorder %s24, 0
      %s27 = sadd.s32 %s26, 1
      %s28 = scalar_select %p25, %s26, %s27
      %p31 = pneg %p25
      %p32 = scmp.eq.s32.totalorder %s16, 1
      %p33 = por %p31, %p32
      %p34 = scmp.ne.s32.totalorder %s26, %s29
      %p35 = scmp.eq.s32.totalorder %s16, 0
      %p36 = por %p34, %p35
      %p37 = scmp.ne.s32.totalorder %s26, %s29
      %p38 = scmp.eq.s32.totalorder %s21, 1
      %p39 = por %p37, %p38
      %p40 = scmp.ne.s32.totalorder %s29, %s30
      %p41 = scmp.eq.s32.totalorder %s21, 0
      %p42 = por %p40, %p41
      %p43 = scmp.ne.s32.totalorder %s29, %s30
      %p44 = scmp.eq.s32.totalorder %s22, 1
      %p45 = por %p43, %p44
      %p47 = scmp.ne.s32.totalorder %s30, %s46
      %p48 = scmp.eq.s32.totalorder %s22, 0
      %p49 = por %p47, %p48
      %s51 = sadd.s32 %s50, 1
      %p54 = scmp.eq.s32.totalorder %s16, 1
      %p55 = scmp.ne.s32.totalorder %s50, %s52
      %p56 = scmp.eq.s32.totalorder %s16, 0
      %p57 = por %p55, %p56
      %p58 = scmp.ne.s32.totalorder %s50, %s52
      %p59 = scmp.eq.s32.totalorder %s21, 1
      %p60 = por %p58, %p59
      %p61 = scmp.ne.s32.totalorder %s52, %s53
      %p62 = scmp.eq.s32.totalorder %s21, 0
      %p63 = por %p61, %p62
      %p64 = scmp.ne.s32.totalorder %s52, %s53
      %p65 = scmp.eq.s32.totalorder %s22, 1
      %p66 = por %p64, %p65
      %p68 = scmp.ne.s32.totalorder %s53, %s67
      %p69 = scmp.eq.s32.totalorder %s22, 0
      %p70 = por %p68, %p69
      %s72 = sadd.s32 %s71, 1
      %p75 = scmp.eq.s32.totalorder %s16, 1
      %p76 = scmp.ne.s32.totalorder %s71, %s73
      %p77 = scmp.eq.s32.totalorder %s16, 0
      %p78 = por %p76, %p77
      %p79 = scmp.ne.s32.totalorder %s71, %s73
      %p80 = scmp.eq.s32.totalorder %s21, 1
      %p81 = por %p79, %p80
      %p82 = scmp.ne.s32.totalorder %s73, %s74
      %p83 = scmp.eq.s32.totalorder %s21, 0
      %p84 = por %p82, %p83
      %p85 = scmp.ne.s32.totalorder %s73, %s74
      %p86 = scmp.eq.s32.totalorder %s22, 1
      %p87 = por %p85, %p86
      %p89 = scmp.ne.s32.totalorder %s74, %s88
      %p90 = scmp.eq.s32.totalorder %s22, 0
      %p91 = por %p89, %p90
      %s92 = ssub.s32 %s16, %s23
      %p93 = scmp.eq.s32.totalorder %s92, 0
      %s95 = sadd.s32 %s94, 1
      %s96 = scalar_select %p93, %s94, %s95
      %p99 = pneg %p93
      %p100 = scmp.eq.s32.totalorder %s16, 1
      %p101 = por %p99, %p100
      %p102 = scmp.ne.s32.totalorder %s94, %s97
      %p103 = scmp.eq.s32.totalorder %s16, 0
      %p104 = por %p102, %p103
      %p105 = scmp.ne.s32.totalorder %s94, %s97
      %p106 = scmp.eq.s32.totalorder %s21, 1
      %p107 = por %p105, %p106
      %p108 = scmp.ne.s32.totalorder %s97, %s98
      %p109 = scmp.eq.s32.totalorder %s21, 0
      %p110 = por %p108, %p109
      %p111 = scmp.ne.s32.totalorder %s97, %s98
      %p112 = scmp.eq.s32.totalorder %s22, 1
      %p113 = por %p111, %p112
      %p115 = scmp.ne.s32.totalorder %s98, %s114
      %p116 = scmp.eq.s32.totalorder %s22, 0
      %p117 = por %p115, %p116
      %p118 = scmp.le.s32.totalorder 1, %s16
      %p119 = scmp.lt.s32.totalorder %s16, 3
      %p120 = pnand %p118, %p119
      %p121 = pneg %p120
      // Predicated region
      $region9: #{tpu_custom_call.1} parent=5 // pred_check
        _
      $region10: #{tpu_custom_call.1} parent=5 // pred_check_branch
        %123 = sbr.rel (%p120) target = $region12
      $region11: #{tpu_custom_call.1} parent=5 // pred_region
        %s124 = ssub.s32 %s16, 1
        // Predicated region
        $region13: #{tpu_custom_call.1} parent=11 // pred_check
          %p125 = pneg %p63
        $region14: #{tpu_custom_call.1} parent=11 // pred_check_branch
          %127 = sbr.rel (%p125) target = $region16
        $region15: #{tpu_custom_call.1} parent=11 // pred_region
          %s129 = ssub.s32 512, 512
          %130 = vsyncadd [#allocation6], %s129
          %s131 = sshll.u32 [#allocation5], 4
          %s132 = int_to_ptr.vmem [resolvable:$true] %s131
          %137 = dma.hbm_to_vmem [thread:$0]  %s1, 512, %s132, [#allocation6], 128, 128, 8
        $region16: #{tpu_custom_call.1} parent=11 // pred_fallthru
          _
        // Predicated region
        $region17: #{tpu_custom_call.1} parent=11 // pred_check
          %p138 = pneg %p84
        $region18: #{tpu_custom_call.1} parent=11 // pred_check_branch
          %140 = sbr.rel (%p138) target = $region20
        $region19: #{tpu_custom_call.1} parent=11 // pred_region
          _
        $region20: #{tpu_custom_call.1} parent=11 // pred_fallthru
          _
      $region12: #{tpu_custom_call.1} parent=5 // pred_fallthru
        _
      %p141 = scmp.lt.s32.totalorder %s16, 2
      // Predicated region
      $region21: #{tpu_custom_call.1} parent=5 // pred_check
        %p142 = pneg %p141
      $region22: #{tpu_custom_call.1} parent=5 // pred_check_branch
        %144 = sbr.rel (%p142) target = $region24
      $region23: #{tpu_custom_call.1} parent=5 // pred_region
        // Predicated region
        $region25: #{tpu_custom_call.1} parent=23 // pred_check
          %p145 = pneg %p36
        $region26: #{tpu_custom_call.1} parent=23 // pred_check_branch
          %147 = sbr.rel (%p145) target = $region28
        $region27: #{tpu_custom_call.1} parent=23 // pred_region
          %s148 = sand.u32 %s26, 1
          %s149 = scalar_lea.sflag [#allocation3], %s148
          %s150 = sand.u32 %s26, 1
          %s151 = smul.addr %s150, 8
          %s152 = scalar_lea.vmem [#allocation2], %s151
          %s154 = ssub.s32 128, 128
          %155 = vsyncadd %s149, %s154
          %s156 = smul.addr %s16, 128
          %s157 = scalar_lea.hbm %s0, %s156
          %s159 = sshll.u32 %s152, 4
          %s160 = int_to_ptr.vmem [resolvable:$true] %s159
          %162 = dma.hbm_to_vmem [thread:$0]  %s157, 128, %s160, %s149
        $region28: #{tpu_custom_call.1} parent=23 // pred_fallthru
          _
      $region24: #{tpu_custom_call.1} parent=5 // pred_fallthru
        _
      %p163 = scmp.le.s32.totalorder 1, %s16
      %p164 = scmp.lt.s32.totalorder %s16, 3
      %p165 = pnand %p163, %p164
      %p166 = pneg %p165
      // Predicated region
      $region29: #{tpu_custom_call.1} parent=5 // pred_check
        _
      $region30: #{tpu_custom_call.1} parent=5 // pred_check_branch
        %168 = sbr.rel (%p165) target = $region32
      $region31: #{tpu_custom_call.1} parent=5 // pred_region
        %s169 = ssub.s32 %s16, 1
        %s170 = sand.u32 %s29, 1
        %s171 = scalar_lea.sflag [#allocation3], %s170
        %s172 = sand.u32 %s29, 1
        %s173 = smul.addr %s172, 8
        %s174 = scalar_lea.vmem [#allocation2], %s173
        // Predicated region
        $region33: #{tpu_custom_call.1} parent=31 // pred_check
          %p175 = pneg %p42
        $region34: #{tpu_custom_call.1} parent=31 // pred_check_branch
          %177 = sbr.rel (%p175) target = $region36
        $region35: #{tpu_custom_call.1} parent=31 // pred_region
          %178 = dma.done %s171, 128
        $region36: #{tpu_custom_call.1} parent=31 // pred_fallthru
          _
        // Predicated region
        $region37: #{tpu_custom_call.1} parent=31 // pred_check
          %p179 = pneg %p63
        $region38: #{tpu_custom_call.1} parent=31 // pred_check_branch
          %181 = sbr.rel (%p179) target = $region40
        $region39: #{tpu_custom_call.1} parent=31 // pred_region
          %182 = dma.done [#allocation6], 512
        $region40: #{tpu_custom_call.1} parent=31 // pred_fallthru
          _
        %s183 = sand.u32 %s29, 1
        %s184 = scalar_lea.sflag [#allocation3], %s183
        %s185 = sand.u32 %s29, 1
        %s186 = smul.addr %s185, 8
        %s187 = scalar_lea.vmem [#allocation2], %s186
        %p188 = pneg %p42
        %p189 = pneg %p39
        %p190 = pneg %p63
        %p191 = pneg %p60
        %p192 = pneg %p84
        %p193 = pneg %p81
        %p194 = pneg %p110
        %p195 = pneg %p107
        %s196 = sand.u32 %s97, 1
        %s197 = scalar_lea.sflag [#allocation4], %s196
        %s198 = sand.u32 %s97, 1
        %s199 = smul.addr %s198, 8
        %s200 = scalar_lea.vmem [#allocation7], %s199
        %v201 = vld [vmem:[%s174] sm:$0xff]
        %vm202 = vcmask 261120
        %v203 = vsel %vm202, %v201, 0.0
        %204 = vadd.xlane.f32.xlu0 %v203
        %v205 = vpop.xlane.xlu0 %204
        %v206 = vrcp.pop 32.0
        %v207 = vmul.f32 %v205, %v206
        %v208 = vsub.f32 %v201, %v207
        %v209 = vmul.f32 %v208, %v208
        %v210 = vsel %vm202, %v209, 0.0
        %211 = vadd.xlane.f32.xlu0 %v210
        %v212 = vpop.xlane.xlu0 %211
        %v213 = vmul.f32 %v212, %v206
        %v214 = vadd.f32 %v213, 1e-05
        %v215 = vrsqrt.pop %v214
        %v216 = vmul.f32 %v208, %v215
        %v217 = vld [vmem:[#allocation5] sm:$0xff]
        %v218 = vld [vmem:[#allocation5 + $0x8] sm:$0xff]
        %v219 = vld [vmem:[#allocation5 + $0x10] sm:$0xff]
        %v220 = vld [vmem:[#allocation5 + $0x18] sm:$0xff]
        %v221 = vld [vmem:[%s2] sm:$0x1]
        %v223 = vlaneseq
        %v224 = vshrl.u32 %v223, 7
        %v225 = vsub.s32 0, %v224
        %v226 = vrot.slane %v221, %v225
        %v229 = vsel %vm202, %v216, 0
        %231 = vmatprep.subr.mxu0 0.0
        %232 = vmatpush1.msra.mxu0 0.0
        %233 = vmatprep.subr.mxu0 0.0
        %234 = vmatpush1.msra.mxu0 0.0
        %235 = vmatprep.subr.mxu0 0.0
        %236 = vmatpush1.msra.mxu0 0.0
        %237 = vmatprep.subr.mxu0 0.0
        %238 = vmatpush1.msra.mxu0 0.0
        %239 = vmatprep.subr.mxu0 0.0
        %240 = vmatpush1.msra.mxu0 0.0
        %241 = vmatprep.subr.mxu0 0.0
        %242 = vmatpush1.msra.mxu0 0.0
        %243 = vmatprep.subr.mxu0 0.0
        %244 = vmatpush1.msra.mxu0 0.0
        %245 = vmatprep.subr.mxu0 0.0
        %246 = vmatpush1.msra.mxu0 0.0
        %247 = vmatprep.subr.mxu0 0.0
        %248 = vmatpush1.msra.mxu0 0.0
        %249 = vmatprep.subr.mxu0 0.0
        %250 = vmatpush1.msra.mxu0 0.0
        %251 = vmatprep.subr.mxu0 0.0
        %252 = vmatpush1.msra.mxu0 0.0
        %253 = vmatprep.subr.mxu0 0.0
        %254 = vmatpush1.msra.mxu0 0.0
        %255 = vmatprep.subr.mxu0 0.0
        %256 = vmatpush1.msra.mxu0 %v220
        %257 = vmatprep.subr.mxu0 0.0
        %258 = vmatpush1.msra.mxu0 %v219
        %259 = vmatprep.subr.mxu0 0.0
        %260 = vmatpush1.msra.mxu0 %v218
        %261 = vmatprep.subr.mxu0 0.0
        %262 = vmatpush1.msra.mxu0 %v217
        %263 = vmatprep.subr.mxu0 0.0
        %264 = vmatpush2.msra.mxu0 0.0
        %265 = vmatprep.subr.mxu0 0.0
        %266 = vmatpush2.msra.mxu0 0.0
        %267 = vmatprep.subr.mxu0 0.0
        %268 = vmatpush2.msra.mxu0 0.0
        %269 = vmatprep.subr.mxu0 0.0
        %270 = vmatpush2.msra.mxu0 0.0
        %271 = vmatprep.subr.mxu0 0.0
        %272 = vmatpush2.msra.mxu0 0.0
        %273 = vmatprep.subr.mxu0 0.0
        %274 = vmatpush2.msra.mxu0 0.0
        %275 = vmatprep.subr.mxu0 0.0
        %276 = vmatpush2.msra.mxu0 0.0
        %277 = vmatprep.subr.mxu0 0.0
        %278 = vmatpush2.msra.mxu0 0.0
        %279 = vmatprep.subr.mxu0 0.0
        %280 = vmatpush2.msra.mxu0 0.0
        %281 = vmatprep.subr.mxu0 0.0
        %282 = vmatpush2.msra.mxu0 0.0
        %283 = vmatprep.subr.mxu0 0.0
        %284 = vmatpush2.msra.mxu0 0.0
        %285 = vmatprep.subr.mxu0 0.0
        %286 = vmatpush2.msra.mxu0 0.0
        %287 = vmatprep.subr.mxu0 0.0
        %288 = vmatpush2.msra.mxu0 0.0
        %289 = vmatprep.subr.mxu0 0.0
        %290 = vmatpush2.msra.mxu0 0.0
        %291 = vmatprep.subr.mxu0 0.0
        %292 = vmatpush2.msra.mxu0 0.0
        %293 = vmatprep.subr.mxu0 0.0
        %294 = vmatpush2.msra.mxu0 0.0
        %295 = vmatprep.mubr.f32.mxu0 0.0
        %296 = vmatmul.mubr.f32.gmra.mxu0 %v229
        %v297 = vpop.f32.mrf.mxu0
        %v298 = vadd.f32 %v226, %v297
        %v299 = vpop.f32.mrf.mxu0
        %300 = vdwg.mxu0
        %vm301 = vcmask 523264
        %302 = vst.msk [vmem:[%s200] sm:$0xff] %vm301, %v298
        %s303 = sand.u32 %s97, 1
        %s304 = scalar_lea.sflag [#allocation4], %s303
        %s305 = sand.u32 %s97, 1
        %s306 = smul.addr %s305, 8
        %s307 = scalar_lea.vmem [#allocation7], %s306
        // Predicated region
        $region41: #{tpu_custom_call.1} parent=31 // pred_check
          %p308 = pneg %p107
        $region42: #{tpu_custom_call.1} parent=31 // pred_check_branch
          %310 = sbr.rel (%p308) target = $region44
        $region43: #{tpu_custom_call.1} parent=31 // pred_region
          %s312 = ssub.s32 128, 128
          %313 = vsyncadd %s304, %s312
          %s314 = smul.addr %s21, 128
          %s315 = scalar_lea.hbm %s3, %s314
          %s317 = sshll.u32 %s307, 4
          %s318 = int_to_ptr.vmem [resolvable:$true] %s317
          %320 = dma.vmem_to_hbm [thread:$0]  %s318, 128, %s315, %s304
        $region44: #{tpu_custom_call.1} parent=31 // pred_fallthru
          _
      $region32: #{tpu_custom_call.1} parent=5 // pred_fallthru
        _
      %p321 = scmp.le.s32.totalorder 2, %s16
      // Predicated region
      $region45: #{tpu_custom_call.1} parent=5 // pred_check
        %p322 = pneg %p321
      $region46: #{tpu_custom_call.1} parent=5 // pred_check_branch
        %324 = sbr.rel (%p322) target = $region48
      $region47: #{tpu_custom_call.1} parent=5 // pred_region
        %s325 = ssub.s32 %s16, 2
        // Predicated region
        $region49: #{tpu_custom_call.1} parent=47 // pred_check
          %p326 = pneg %p113
        $region50: #{tpu_custom_call.1} parent=47 // pred_check_branch
          %328 = sbr.rel (%p326) target = $region52
        $region51: #{tpu_custom_call.1} parent=47 // pred_region
          %s329 = sand.u32 %s98, 1
          %s330 = scalar_lea.sflag [#allocation4], %s329
          %s331 = sand.u32 %s98, 1
          %s332 = smul.addr %s331, 8
          %s333 = scalar_lea.vmem [#allocation7], %s332
          %334 = dma.done %s330, 128
        $region52: #{tpu_custom_call.1} parent=47 // pred_fallthru
          _
      $region48: #{tpu_custom_call.1} parent=5 // pred_fallthru
        _
    $region6: #{tpu_custom_call.1} parent=1 // loop_footer
      %s20 = sadd.s32 1, %s16
    $region7: #{tpu_custom_call.1} parent=1 // loop_footer_branch
      %15 = sbr.rel target = $region3
    $region8: #{tpu_custom_call.1} parent=1 // loop_exit
      _
    %335 = vsyncpa [#allocation3], 1
    %s336 = scalar_lea.sflag [#allocation3], 1
    %337 = vsyncpa %s336, 1
    %338 = vsyncpa [#allocation6], 1
    %339 = vsyncpa [#allocation4], 1
    %s340 = scalar_lea.sflag [#allocation4], 1
    %341 = vsyncpa %s340, 1

</llo_original>
